<compile_context>
chip_gen: v7x
topology: tpu7x:2x2x1
jax: 0.10.0
libtpu: 0.0.40
codegen_flags: <defaults>
</compile_context>

<pallas_src>
import functools
import numpy as np
import jax
import jax.numpy as jnp
from jax.experimental import pallas as pl
from jax.experimental.pallas import tpu as pltpu


def _softplus(x):
    # numerically-stable softplus
    return jnp.maximum(x, 0.0) + jnp.log1p(jnp.exp(-jnp.abs(x)))


def mvn_params_kernel(obs_ref, w1_ref, b1_ref, w2_ref, b2_ref,
                      whead_ref, bhead_ref, loc_ref, tril_ref, *, act_dim):
    w_dtype = w1_ref.dtype      # f32 by default; bf16 if packed with bf16
    x = obs_ref[...].astype(w_dtype)

    # logits_module: 2-layer MLP with ReLU (f32 accumulation, f32 elementwise)
    h1 = jnp.maximum(
        jnp.dot(x, w1_ref[...], preferred_element_type=jnp.float32)
        + b1_ref[...], 0.0)
    h2 = jnp.maximum(
        jnp.dot(h1.astype(w_dtype), w2_ref[...],
                preferred_element_type=jnp.float32) + b2_ref[...], 0.0)

    # Fused heads: [loc | scattered tril] in one dot.
    head = (jnp.dot(h2.astype(w_dtype), whead_ref[...],
                    preferred_element_type=jnp.float32) + bhead_ref[...])

    act_sq = act_dim * act_dim
    loc = head[:, :act_dim]
    tril = head[:, act_dim:]

    # Diagonal entry (i, i) of the flattened tril lives at column i*(act_dim+1).
    # Built from a single-row iota: act_dim one-vreg compares, O(1) full-tile work.
    col = jax.lax.broadcasted_iota(jnp.int32, (1, act_sq), 1)
    is_diag = col < 0                                   # all-False, shape [1, act_sq]
    for i in range(act_dim):
        is_diag = is_diag | (col == i * (act_dim + 1))
    tril = jnp.where(is_diag, _softplus(tril), tril)

    loc_ref[...] = loc.astype(loc_ref.dtype)
    tril_ref[...] = tril.astype(tril_ref.dtype)


def make_params(key, obs_dim, hidden, act_dim, dtype=jnp.float32):
    """Deterministic parameter init (fan-in scaled normal) — raw module params."""
    tril_size = act_dim * (act_dim + 1) // 2
    ks = jax.random.split(key, 8)

    def lin(kw, kb, fan_in, fan_out):
        w = jax.random.normal(kw, (fan_in, fan_out), dtype) / jnp.sqrt(
            jnp.asarray(fan_in, dtype))
        b = 0.01 * jax.random.normal(kb, (1, fan_out), dtype)
        return w, b

    w1, b1 = lin(ks[0], ks[1], obs_dim, hidden)
    w2, b2 = lin(ks[2], ks[3], hidden, hidden)
    wloc, bloc = lin(ks[4], ks[5], hidden, act_dim)
    wtril, btril = lin(ks[6], ks[7], hidden, tril_size)
    return dict(w1=w1, b1=b1, w2=w2, b2=b2,
                wloc=wloc, bloc=bloc, wtril=wtril, btril=btril)


def pack_params(params, act_dim, compute_dtype=None):
    """Fold the tril scatter into the head weight, fuse the heads, and pad the
    hidden dim to a lane-dense multiple of 128.  Done once, host/JAX-side.

    compute_dtype=jnp.bfloat16 stores the matmul weights in bf16 (f32 accum in
    the kernel); biases stay f32.  Default keeps everything f32.
    """
    w1, b1 = params["w1"], params["b1"]
    w2, b2 = params["w2"], params["b2"]
    wloc, bloc = params["wloc"], params["bloc"]
    wtril, btril = params["wtril"], params["btril"]

    obs_dim, hidden = w1.shape
    act_sq = act_dim * act_dim
    tril_size = act_dim * (act_dim + 1) // 2
    head_w = act_dim + act_sq
    hidden_pad = -(-hidden // 128) * 128

    # one-hot scatter: flat tril index k -> row-major (i, j), j <= i
    scatter = np.zeros((tril_size, act_sq), np.float32)
    k = 0
    for i in range(act_dim):
        for j in range(i + 1):
            scatter[k, i * act_dim + j] = 1.0
            k += 1
    scatter = jnp.asarray(scatter, wtril.dtype)

    # Fused head: [loc | tril @ scatter], hidden rows padded with zeros (exact).
    whead = jnp.concatenate([wloc, wtril @ scatter], axis=1)        # [H, head_w]
    bhead = jnp.concatenate([bloc, btril @ scatter], axis=1)        # [1, head_w]

    def pad_rows(w):
        return jnp.pad(w, ((0, hidden_pad - hidden), (0, 0)))

    def pad_cols(w):
        return jnp.pad(w, ((0, 0), (0, hidden_pad - hidden)))

    w1p = pad_cols(w1)                    # [obs_dim, Hp]
    b1p = pad_cols(b1)                    # [1, Hp]
    w2p = pad_rows(pad_cols(w2))          # [Hp, Hp]
    b2p = pad_cols(b2)                    # [1, Hp]
    wheadp = pad_rows(whead)              # [Hp, head_w]

    wdt = compute_dtype if compute_dtype is not None else w1.dtype
    return dict(w1=w1p.astype(wdt), b1=b1p.astype(jnp.float32),
                w2=w2p.astype(wdt), b2=b2p.astype(jnp.float32),
                whead=wheadp.astype(wdt), bhead=bhead.astype(jnp.float32),
                hidden_pad=hidden_pad, head_w=head_w)


def _select_batch_tile(B, block_batch):
    """Sublane-aligned batch tile; big by default, but >=2 grid steps so both
    v7x TensorCores engage on the 'parallel' batch axis."""
    if B <= 8:
        return B                               # single full-batch block
    if block_batch is not None:
        return max(8, (min(block_batch, B) // 8) * 8)
    tb = 2048                                  # large tile amortizes per-step overhead
    tb = min(tb, -(-pl.cdiv(B, 2) // 8) * 8)   # cap: at least 2 grid steps
    return max(8, (tb // 8) * 8)


def mvn_params_forward(obs, packed, act_dim, block_batch=None):
    B, obs_dim = obs.shape
    hidden_pad = packed["hidden_pad"]
    head_w = packed["head_w"]
    act_sq = act_dim * act_dim

    TB = _select_batch_tile(B, block_batch)
    grid = (pl.cdiv(B, TB),)   # partial last block: Pallas masks OOB writeback

    full = lambda shape: pl.BlockSpec(shape, lambda i: (0,) * len(shape))

    wbytes = sum(int(np.prod(packed[k].shape)) * packed[k].dtype.itemsize
                 for k in ("w1", "b1", "w2", "b2", "whead", "bhead"))
    cost = pl.CostEstimate(
        flops=2 * B * (obs_dim * hidden_pad + hidden_pad * hidden_pad
                       + hidden_pad * head_w),
        transcendentals=2 * B * act_sq,
        bytes_accessed=(B * obs_dim * obs.dtype.itemsize + wbytes
                        + B * head_w * obs.dtype.itemsize),
    )

    loc, tril_flat = pl.pallas_call(
        functools.partial(mvn_params_kernel, act_dim=act_dim),
        out_shape=(jax.ShapeDtypeStruct((B, act_dim), obs.dtype),
                   jax.ShapeDtypeStruct((B, act_sq), obs.dtype)),
        grid_spec=pltpu.PrefetchScalarGridSpec(
            num_scalar_prefetch=0,
            grid=grid,
            in_specs=[
                pl.BlockSpec((TB, obs_dim), lambda i: (i, 0)),   # obs tile
                full((obs_dim, hidden_pad)),                      # w1
                full((1, hidden_pad)),                            # b1
                full((hidden_pad, hidden_pad)),                   # w2
                full((1, hidden_pad)),                            # b2
                full((hidden_pad, head_w)),                       # fused head W
                full((1, head_w)),                                # fused head b
            ],
            out_specs=(pl.BlockSpec((TB, act_dim), lambda i: (i, 0)),
                       pl.BlockSpec((TB, act_sq), lambda i: (i, 0))),
        ),
        compiler_params=pltpu.CompilerParams(
            dimension_semantics=("parallel",)),
        cost_estimate=cost,
    )(obs, packed["w1"], packed["b1"], packed["w2"], packed["b2"],
      packed["whead"], packed["bhead"])

    # free metadata reshape
    return {"loc": loc, "scale_tril": tril_flat.reshape(B, act_dim, act_dim)}


def _reference(obs, params, act_dim):
    """Pure-JAX reference (unfused) for correctness check."""
    h1 = jax.nn.relu(obs @ params["w1"] + params["b1"])
    h2 = jax.nn.relu(h1 @ params["w2"] + params["b2"])
    loc = h2 @ params["wloc"] + params["bloc"]
    flat = h2 @ params["wtril"] + params["btril"]
    B = obs.shape[0]
    tril = jnp.zeros((B, act_dim, act_dim), obs.dtype)
    k = 0
    for i in range(act_dim):
        for j in range(i + 1):
            v = flat[:, k]
            if i == j:
                v = jax.nn.softplus(v)
            tril = tril.at[:, i, j].set(v)
            k += 1
    return {"loc": loc, "scale_tril": tril}


def _check(out, ref, B, act_dim):
    assert out["loc"].shape == (B, act_dim)
    assert out["scale_tril"].shape == (B, act_dim, act_dim)
    np.testing.assert_allclose(np.asarray(out["loc"]),
                               np.asarray(ref["loc"]), rtol=1e-5, atol=1e-5)
    np.testing.assert_allclose(np.asarray(out["scale_tril"]),
                               np.asarray(ref["scale_tril"]), rtol=1e-5, atol=1e-5)


if __name__ == "__main__":
    key = jax.random.PRNGKey(0)
    k1, k2, k3, k_par = jax.random.split(key, 4)

    OBS_DIM, HIDDEN, ACT_DIM = 16, 32, 4
    params = make_params(k_par, OBS_DIM, HIDDEN, ACT_DIM)
    packed = pack_params(params, ACT_DIM)   # f32 path; pass jnp.bfloat16 for bf16 weights

    # Case 1: small batch, single full-batch block.
    B1 = 8
    obs1 = jax.random.normal(k1, (B1, OBS_DIM), jnp.float32)
    out1 = mvn_params_forward(obs1, packed, ACT_DIM)
    jax.block_until_ready(out1)
    _check(out1, _reference(obs1, params, ACT_DIM), B1, ACT_DIM)

    # Case 2: larger batch, explicit tile -> multi-step pipelined grid.
    B2 = 64
    obs2 = jax.random.normal(k2, (B2, OBS_DIM), jnp.float32)
    out2 = mvn_params_forward(obs2, packed, ACT_DIM, block_batch=32)
    jax.block_until_ready(out2)
    _check(out2, _reference(obs2, params, ACT_DIM), B2, ACT_DIM)

    # Case 3: non-tile-aligned batch, default tile heuristic -> partial last
    # block handled by Pallas (no wrapper pad / slice).
    B3 = 20
    obs3 = jax.random.normal(k3, (B3, OBS_DIM), jnp.float32)
    out3 = mvn_params_forward(obs3, packed, ACT_DIM)
    jax.block_until_ready(out3)
    _check(out3, _reference(obs3, params, ACT_DIM), B3, ACT_DIM)

    print("KERNEL_OK")
</pallas_src>

<mosaic_0001>
module attributes {stable_mosaic.version = 11 : i64} {
  func.func @mvn_params_kernel(%arg0: i32, %arg1: memref<8x16xf32, #tpu.memory_space<vmem>>, %arg2: memref<16x128xf32, #tpu.memory_space<vmem>>, %arg3: memref<1x128xf32, #tpu.memory_space<vmem>>, %arg4: memref<128x128xf32, #tpu.memory_space<vmem>>, %arg5: memref<1x128xf32, #tpu.memory_space<vmem>>, %arg6: memref<128x20xf32, #tpu.memory_space<vmem>>, %arg7: memref<1x20xf32, #tpu.memory_space<vmem>>, %arg8: memref<8x4xf32, #tpu.memory_space<vmem>>, %arg9: memref<8x16xf32, #tpu.memory_space<vmem>>) attributes {dimension_semantics = [#tpu.dimension_semantics<parallel>], iteration_bounds = array<i64: 1>, scalar_prefetch = 0 : i64, scratch_operands = 0 : i64, tpu.core_type = #tpu.core_type<tc>, window_params = [{transform_indices = @transform_0, window_bounds = array<i64: 8, 16>}, {pipeline_mode = #tpu.pipeline_mode<synchronous>, transform_indices = @transform_1, window_bounds = array<i64: 16, 128>}, {pipeline_mode = #tpu.pipeline_mode<synchronous>, transform_indices = @transform_2, window_bounds = array<i64: 1, 128>}, {pipeline_mode = #tpu.pipeline_mode<synchronous>, transform_indices = @transform_3, window_bounds = array<i64: 128, 128>}, {pipeline_mode = #tpu.pipeline_mode<synchronous>, transform_indices = @transform_4, window_bounds = array<i64: 1, 128>}, {pipeline_mode = #tpu.pipeline_mode<synchronous>, transform_indices = @transform_5, window_bounds = array<i64: 128, 20>}, {pipeline_mode = #tpu.pipeline_mode<synchronous>, transform_indices = @transform_6, window_bounds = array<i64: 1, 20>}, {transform_indices = @transform_7, window_bounds = array<i64: 8, 4>}, {transform_indices = @transform_8, window_bounds = array<i64: 8, 16>}]} {
    %c0 = arith.constant 0 : index
    %c0_0 = arith.constant 0 : index
    %0 = vector.load %arg1[%c0, %c0_0] : memref<8x16xf32, #tpu.memory_space<vmem>>, vector<8x16xf32>
    %c0_1 = arith.constant 0 : index
    %c0_2 = arith.constant 0 : index
    %1 = vector.load %arg2[%c0_1, %c0_2] : memref<16x128xf32, #tpu.memory_space<vmem>>, vector<16x128xf32>
    %cst = arith.constant dense<0.000000e+00> : vector<8x128xf32>
    %2 = tpu.matmul %0, %1, %cst {dimension_numbers = #tpu.dot_dimension_numbers<[1], [0], [0], [1], [0, 0, 1, 1], [], []>} : vector<8x16xf32>, vector<16x128xf32>, vector<8x128xf32> -> vector<8x128xf32>
    %c0_3 = arith.constant 0 : index
    %c0_4 = arith.constant 0 : index
    %3 = vector.load %arg3[%c0_3, %c0_4] : memref<1x128xf32, #tpu.memory_space<vmem>>, vector<1x128xf32>
    %4 = vector.broadcast %3 : vector<1x128xf32> to vector<8x128xf32>
    %5 = arith.addf %2, %4 : vector<8x128xf32>
    %cst_5 = arith.constant 0.000000e+00 : f32
    %6 = vector.broadcast %cst_5 : f32 to vector<8x128xf32>
    %7 = arith.maximumf %5, %6 : vector<8x128xf32>
    %c0_6 = arith.constant 0 : index
    %c0_7 = arith.constant 0 : index
    %8 = vector.load %arg4[%c0_6, %c0_7] : memref<128x128xf32, #tpu.memory_space<vmem>>, vector<128x128xf32>
    %cst_8 = arith.constant dense<0.000000e+00> : vector<8x128xf32>
    %9 = tpu.matmul %7, %8, %cst_8 {dimension_numbers = #tpu.dot_dimension_numbers<[1], [0], [0], [1], [0, 0, 1, 1], [], []>} : vector<8x128xf32>, vector<128x128xf32>, vector<8x128xf32> -> vector<8x128xf32>
    %c0_9 = arith.constant 0 : index
    %c0_10 = arith.constant 0 : index
    %10 = vector.load %arg5[%c0_9, %c0_10] : memref<1x128xf32, #tpu.memory_space<vmem>>, vector<1x128xf32>
    %11 = vector.broadcast %10 : vector<1x128xf32> to vector<8x128xf32>
    %12 = arith.addf %9, %11 : vector<8x128xf32>
    %cst_11 = arith.constant 0.000000e+00 : f32
    %13 = vector.broadcast %cst_11 : f32 to vector<8x128xf32>
    %14 = arith.maximumf %12, %13 : vector<8x128xf32>
    %c0_12 = arith.constant 0 : index
    %c0_13 = arith.constant 0 : index
    %15 = vector.load %arg6[%c0_12, %c0_13] : memref<128x20xf32, #tpu.memory_space<vmem>>, vector<128x20xf32>
    %cst_14 = arith.constant dense<0.000000e+00> : vector<8x20xf32>
    %16 = tpu.matmul %14, %15, %cst_14 {dimension_numbers = #tpu.dot_dimension_numbers<[1], [0], [0], [1], [0, 0, 1, 1], [], []>} : vector<8x128xf32>, vector<128x20xf32>, vector<8x20xf32> -> vector<8x20xf32>
    %c0_15 = arith.constant 0 : index
    %c0_16 = arith.constant 0 : index
    %17 = vector.load %arg7[%c0_15, %c0_16] : memref<1x20xf32, #tpu.memory_space<vmem>>, vector<1x20xf32>
    %18 = vector.broadcast %17 : vector<1x20xf32> to vector<8x20xf32>
    %19 = arith.addf %16, %18 : vector<8x20xf32>
    %20 = vector.extract_strided_slice %19 {offsets = [0, 0], sizes = [8, 4], strides = [1, 1]} : vector<8x20xf32> to vector<8x4xf32>
    %21 = vector.extract_strided_slice %19 {offsets = [0, 4], sizes = [8, 16], strides = [1, 1]} : vector<8x20xf32> to vector<8x16xf32>
    %22 = tpu.iota {dimensions = array<i32: 1>} : vector<1x16xi32>
    %c0_i32 = arith.constant 0 : i32
    %23 = vector.broadcast %c0_i32 : i32 to vector<1x16xi32>
    %24 = arith.cmpi slt, %22, %23 : vector<1x16xi32>
    %c0_i32_17 = arith.constant 0 : i32
    %25 = vector.broadcast %c0_i32_17 : i32 to vector<1x16xi32>
    %26 = arith.cmpi eq, %22, %25 : vector<1x16xi32>
    %27 = arith.ori %24, %26 : vector<1x16xi1>
    %c5_i32 = arith.constant 5 : i32
    %28 = vector.broadcast %c5_i32 : i32 to vector<1x16xi32>
    %29 = arith.cmpi eq, %22, %28 : vector<1x16xi32>
    %30 = arith.ori %27, %29 : vector<1x16xi1>
    %c10_i32 = arith.constant 10 : i32
    %31 = vector.broadcast %c10_i32 : i32 to vector<1x16xi32>
    %32 = arith.cmpi eq, %22, %31 : vector<1x16xi32>
    %33 = arith.ori %30, %32 : vector<1x16xi1>
    %c15_i32 = arith.constant 15 : i32
    %34 = vector.broadcast %c15_i32 : i32 to vector<1x16xi32>
    %35 = arith.cmpi eq, %22, %34 : vector<1x16xi32>
    %36 = arith.ori %33, %35 : vector<1x16xi1>
    %cst_18 = arith.constant 0.000000e+00 : f32
    %37 = vector.broadcast %cst_18 : f32 to vector<8x16xf32>
    %38 = arith.maximumf %21, %37 : vector<8x16xf32>
    %39 = math.absf %21 : vector<8x16xf32>
    %cst_19 = arith.constant 0.000000e+00 : f32
    %40 = vector.broadcast %cst_19 : f32 to vector<8x16xf32>
    %41 = arith.subf %40, %39 : vector<8x16xf32>
    %42 = math.exp %41 : vector<8x16xf32>
    %43 = math.log1p %42 : vector<8x16xf32>
    %44 = arith.addf %38, %43 : vector<8x16xf32>
    %45 = vector.shape_cast %36 : vector<1x16xi1> to vector<1x16xi1>
    %46 = vector.broadcast %45 : vector<1x16xi1> to vector<8x16xi1>
    %47 = arith.select %46, %44, %21 : vector<8x16xi1>, vector<8x16xf32>
    %c0_20 = arith.constant 0 : index
    %c0_21 = arith.constant 0 : index
    %48 = vector.load %arg8[%c0_20, %c0_21] : memref<8x4xf32, #tpu.memory_space<vmem>>, vector<8x4xf32>
    tpu.vector_store %arg8[%c0_20, %c0_21], %20 {strides = array<i32>} : memref<8x4xf32, #tpu.memory_space<vmem>>, vector<8x4xf32>,
    %c0_22 = arith.constant 0 : index
    %c0_23 = arith.constant 0 : index
    %49 = vector.load %arg9[%c0_22, %c0_23] : memref<8x16xf32, #tpu.memory_space<vmem>>, vector<8x16xf32>
    tpu.vector_store %arg9[%c0_22, %c0_23], %47 {strides = array<i32>} : memref<8x16xf32, #tpu.memory_space<vmem>>, vector<8x16xf32>,
    return
  }
  func.func @transform_0(%arg0: i32) -> (i32, i32) {
    %c0_i32 = arith.constant 0 : i32
    %c0_i32_0 = arith.constant 0 : i32
    return %arg0, %c0_i32 : i32, i32
  }
  func.func @transform_1(%arg0: i32) -> (i32, i32) {
    %c0_i32 = arith.constant 0 : i32
    %c0_i32_0 = arith.constant 0 : i32
    %c0_i32_1 = arith.constant 0 : i32
    return %c0_i32, %c0_i32_0 : i32, i32
  }
  func.func @transform_2(%arg0: i32) -> (i32, i32) {
    %c0_i32 = arith.constant 0 : i32
    %c0_i32_0 = arith.constant 0 : i32
    %c0_i32_1 = arith.constant 0 : i32
    return %c0_i32, %c0_i32_0 : i32, i32
  }
  func.func @transform_3(%arg0: i32) -> (i32, i32) {
    %c0_i32 = arith.constant 0 : i32
    %c0_i32_0 = arith.constant 0 : i32
    %c0_i32_1 = arith.constant 0 : i32
    return %c0_i32, %c0_i32_0 : i32, i32
  }
  func.func @transform_4(%arg0: i32) -> (i32, i32) {
    %c0_i32 = arith.constant 0 : i32
    %c0_i32_0 = arith.constant 0 : i32
    %c0_i32_1 = arith.constant 0 : i32
    return %c0_i32, %c0_i32_0 : i32, i32
  }
  func.func @transform_5(%arg0: i32) -> (i32, i32) {
    %c0_i32 = arith.constant 0 : i32
    %c0_i32_0 = arith.constant 0 : i32
    %c0_i32_1 = arith.constant 0 : i32
    return %c0_i32, %c0_i32_0 : i32, i32
  }
  func.func @transform_6(%arg0: i32) -> (i32, i32) {
    %c0_i32 = arith.constant 0 : i32
    %c0_i32_0 = arith.constant 0 : i32
    %c0_i32_1 = arith.constant 0 : i32
    return %c0_i32, %c0_i32_0 : i32, i32
  }
  func.func @transform_7(%arg0: i32) -> (i32, i32) {
    %c0_i32 = arith.constant 0 : i32
    %c0_i32_0 = arith.constant 0 : i32
    return %arg0, %c0_i32 : i32, i32
  }
  func.func @transform_8(%arg0: i32) -> (i32, i32) {
    %c0_i32 = arith.constant 0 : i32
    %c0_i32_0 = arith.constant 0 : i32
    return %arg0, %c0_i32 : i32, i32
  }
}

</mosaic_0001>

<llo_original>
// kernel: tpu_custom_call.1
$region0: #{tpu_custom_call.1}
  #allocation0 [shape = 'u32[]', space=smem, size = 0x4, offset = 0x4, fixed_abs, tag = 'smem constant byte address 0x4 - core index']
  #allocation1 [shape = 'u32[144,128]{1,0:T(1,128)}', space=vmem, size = 0x12000, scoped, tag = 'internal scratch']
  %s0 = inlined_call_operand.vmem [shape: f32[8,16], index: 0, kind: input, shape index: {}]
  %s1 = inlined_call_operand.vmem [shape: f32[16,128], index: 1, kind: input, shape index: {}]
  %s2 = inlined_call_operand.vmem [shape: f32[1,128], index: 2, kind: input, shape index: {}]
  %s3 = inlined_call_operand.vmem [shape: f32[128,128], index: 3, kind: input, shape index: {}]
  %s4 = inlined_call_operand.vmem [shape: f32[1,128], index: 4, kind: input, shape index: {}]
  %s5 = inlined_call_operand.vmem [shape: f32[128,20], index: 5, kind: input, shape index: {}]
  %s6 = inlined_call_operand.vmem [shape: f32[1,20], index: 6, kind: input, shape index: {}]
  %s7 = inlined_call_operand.vmem [shape: f32[8,4], index: 7, kind: output, shape index: {0}]
  %s8 = inlined_call_operand.hbm [shape: f32[8,16], index: 8, kind: output, shape index: {1}]
  %9 = xla_tuple %s7, %s8
  %s10 = sld [smem:[#allocation0]]
  $region46: #{tpu_custom_call.1} parent=0
    _
  %s12 = ssub.s32 1, %s10
  %s13 = scalar_select 0, %s12, %s10
  $region1: #{tpu_custom_call.1} parent=0
    #allocation2 [shape = 'u8[4096]{0}', space=vmem, size = 0x1000, scoped, tag = 'output window, operand 1, single buffered']
    #allocation3 [shape = 's32[1]{0}', space=sflag, size = 0x4, scoped, tag = 'scoped memory for tpu_custom_call.1']
    %14 = vsyncpa [#allocation3], 0
    // Predicated region
    $region2: #{tpu_custom_call.1} parent=1 // pred_check
      _
    $region3: #{tpu_custom_call.1} parent=1 // pred_check_branch
      %16 = sbr.rel (0) target = $region5
    $region4: #{tpu_custom_call.1} parent=1 // pred_region
      _
    $region5: #{tpu_custom_call.1} parent=1 // pred_fallthru
      _
    // Predicated region
    $region6: #{tpu_custom_call.1} parent=1 // pred_check
      _
    $region7: #{tpu_custom_call.1} parent=1 // pred_check_branch
      %18 = sbr.rel (0) target = $region9
    $region8: #{tpu_custom_call.1} parent=1 // pred_region
      _
    $region9: #{tpu_custom_call.1} parent=1 // pred_fallthru
      _
    // Predicated region
    $region10: #{tpu_custom_call.1} parent=1 // pred_check
      _
    $region11: #{tpu_custom_call.1} parent=1 // pred_check_branch
      %20 = sbr.rel (0) target = $region13
    $region12: #{tpu_custom_call.1} parent=1 // pred_region
      _
    $region13: #{tpu_custom_call.1} parent=1 // pred_fallthru
      _
    // Predicated region
    $region14: #{tpu_custom_call.1} parent=1 // pred_check
      _
    $region15: #{tpu_custom_call.1} parent=1 // pred_check_branch
      %22 = sbr.rel (0) target = $region17
    $region16: #{tpu_custom_call.1} parent=1 // pred_region
      _
    $region17: #{tpu_custom_call.1} parent=1 // pred_fallthru
      _
    // Predicated region
    $region18: #{tpu_custom_call.1} parent=1 // pred_check
      _
    $region19: #{tpu_custom_call.1} parent=1 // pred_check_branch
      %24 = sbr.rel (0) target = $region21
    $region20: #{tpu_custom_call.1} parent=1 // pred_region
      _
    $region21: #{tpu_custom_call.1} parent=1 // pred_fallthru
      _
    // Predicated region
    $region22: #{tpu_custom_call.1} parent=1 // pred_check
      _
    $region23: #{tpu_custom_call.1} parent=1 // pred_check_branch
      %26 = sbr.rel (0) target = $region25
    $region24: #{tpu_custom_call.1} parent=1 // pred_region
      _
    $region25: #{tpu_custom_call.1} parent=1 // pred_fallthru
      _
    // Predicated region
    $region26: #{tpu_custom_call.1} parent=1 // pred_check
      _
    $region27: #{tpu_custom_call.1} parent=1 // pred_check_branch
      %28 = sbr.rel (0) target = $region29
    $region28: #{tpu_custom_call.1} parent=1 // pred_region
      _
    $region29: #{tpu_custom_call.1} parent=1 // pred_fallthru
      _
    %v29 = vld [vmem:[%s0] sm:$0xff]
    %v30 = vld [vmem:[%s1] sm:$0xff]
    %v31 = vld [vmem:[%s1 + $0x8] sm:$0xff]
    %v32 = vld [vmem:[%s2] sm:$0x1]
    %v34 = vlaneseq
    %v35 = vshrl.u32 %v34, 7
    %v36 = vsub.s32 0, %v35
    %v37 = vrot.slane %v32, %v36
    %vm39 = vcmask 130048
    %v41 = vsel %vm39, %v29, 0
    %43 = vmatprep.subr.mxu0 0.0
    %44 = vmatpush1.msra.mxu0 %v30
    %45 = vmatprep.subr.mxu0 0.0
    %46 = vmatpush1.msra.mxu0 %v31
    %47 = vmatprep.subr.mxu0 0.0
    %48 = vmatpush1.msra.mxu0 0.0
    %49 = vmatprep.subr.mxu0 0.0
    %50 = vmatpush1.msra.mxu0 0.0
    %51 = vmatprep.subr.mxu0 0.0
    %52 = vmatpush1.msra.mxu0 0.0
    %53 = vmatprep.subr.mxu0 0.0
    %54 = vmatpush1.msra.mxu0 0.0
    %55 = vmatprep.subr.mxu0 0.0
    %56 = vmatpush1.msra.mxu0 0.0
    %57 = vmatprep.subr.mxu0 0.0
    %58 = vmatpush1.msra.mxu0 0.0
    %59 = vmatprep.subr.mxu0 0.0
    %60 = vmatpush1.msra.mxu0 0.0
    %61 = vmatprep.subr.mxu0 0.0
    %62 = vmatpush1.msra.mxu0 0.0
    %63 = vmatprep.subr.mxu0 0.0
    %64 = vmatpush1.msra.mxu0 0.0
    %65 = vmatprep.subr.mxu0 0.0
    %66 = vmatpush1.msra.mxu0 0.0
    %67 = vmatprep.subr.mxu0 0.0
    %68 = vmatpush1.msra.mxu0 0.0
    %69 = vmatprep.subr.mxu0 0.0
    %70 = vmatpush1.msra.mxu0 0.0
    %71 = vmatprep.subr.mxu0 0.0
    %72 = vmatpush1.msra.mxu0 0.0
    %73 = vmatprep.subr.mxu0 0.0
    %74 = vmatpush1.msra.mxu0 0.0
    %75 = vmatprep.subr.mxu0 0.0
    %76 = vmatpush1.msra.mxu0 0.0
    %77 = vmatprep.subr.mxu0 0.0
    %78 = vmatpush1.msra.mxu0 0.0
    %79 = vmatprep.subr.mxu0 0.0
    %80 = vmatpush1.msra.mxu0 0.0
    %81 = vmatprep.subr.mxu0 0.0
    %82 = vmatpush1.msra.mxu0 0.0
    %83 = vmatprep.subr.mxu0 0.0
    %84 = vmatpush1.msra.mxu0 0.0
    %85 = vmatprep.subr.mxu0 0.0
    %86 = vmatpush1.msra.mxu0 0.0
    %87 = vmatprep.subr.mxu0 0.0
    %88 = vmatpush1.msra.mxu0 0.0
    %89 = vmatprep.subr.mxu0 0.0
    %90 = vmatpush1.msra.mxu0 0.0
    %91 = vmatprep.subr.mxu0 0.0
    %92 = vmatpush1.msra.mxu0 0.0
    %93 = vmatprep.subr.mxu0 0.0
    %94 = vmatpush1.msra.mxu0 0.0
    %95 = vmatprep.subr.mxu0 0.0
    %96 = vmatpush1.msra.mxu0 0.0
    %97 = vmatprep.subr.mxu0 0.0
    %98 = vmatpush1.msra.mxu0 0.0
    %99 = vmatprep.subr.mxu0 0.0
    %100 = vmatpush1.msra.mxu0 0.0
    %101 = vmatprep.subr.mxu0 0.0
    %102 = vmatpush1.msra.mxu0 0.0
    %103 = vmatprep.subr.mxu0 0.0
    %104 = vmatpush1.msra.mxu0 0.0
    %105 = vmatprep.subr.mxu0 0.0
    %106 = vmatpush1.msra.mxu0 0.0
    %107 = vmatprep.mubr.f32.mxu0 0.0
    %108 = vmatmul.mubr.f32.gmra.mrb[0].mxu0 %v41
    %v109 = vpop.f32.mrb[0].mxu0
    %v110 = vadd.f32 %v37, %v109
    %v111 = vpop.f32.mrb[0].mxu0
    %112 = vdwg.mxu0
    %v113 = vmax.f32 %v110, 0.0
    %v114 = vld [vmem:[%s3] sm:$0xff]
    %v115 = vld [vmem:[%s3 + $0x8] sm:$0xff]
    %v116 = vld [vmem:[%s3 + $0x10] sm:$0xff]
    %v117 = vld [vmem:[%s3 + $0x18] sm:$0xff]
    %v118 = vld [vmem:[%s3 + $0x20] sm:$0xff]
    %v119 = vld [vmem:[%s3 + $0x28] sm:$0xff]
    %v120 = vld [vmem:[%s3 + $0x30] sm:$0xff]
    %v121 = vld [vmem:[%s3 + $0x38] sm:$0xff]
    %v122 = vld [vmem:[%s3 + $0x40] sm:$0xff]
    %v123 = vld [vmem:[%s3 + $0x48] sm:$0xff]
    %v124 = vld [vmem:[%s3 + $0x50] sm:$0xff]
    %v125 = vld [vmem:[%s3 + $0x58] sm:$0xff]
    %v126 = vld [vmem:[%s3 + $0x60] sm:$0xff]
    %v127 = vld [vmem:[%s3 + $0x68] sm:$0xff]
    %v128 = vld [vmem:[%s3 + $0x70] sm:$0xff]
    %v129 = vld [vmem:[%s3 + $0x78] sm:$0xff]
    %v130 = vld [vmem:[%s4] sm:$0x1]
    %v132 = vlaneseq
    %v133 = vshrl.u32 %v132, 7
    %v134 = vsub.s32 0, %v133
    %v135 = vrot.slane %v130, %v134
    %137 = vmatprep.subr.mxu0 0.0
    %138 = vmatpush1.msra.mxu0 %v114
    %139 = vmatprep.subr.mxu0 0.0
    %140 = vmatpush1.msra.mxu0 %v115
    %141 = vmatprep.subr.mxu0 0.0
    %142 = vmatpush1.msra.mxu0 %v116
    %143 = vmatprep.subr.mxu0 0.0
    %144 = vmatpush1.msra.mxu0 %v117
    %145 = vmatprep.subr.mxu0 0.0
    %146 = vmatpush1.msra.mxu0 %v118
    %147 = vmatprep.subr.mxu0 0.0
    %148 = vmatpush1.msra.mxu0 %v119
    %149 = vmatprep.subr.mxu0 0.0
    %150 = vmatpush1.msra.mxu0 %v120
    %151 = vmatprep.subr.mxu0 0.0
    %152 = vmatpush1.msra.mxu0 %v121
    %153 = vmatprep.subr.mxu0 0.0
    %154 = vmatpush1.msra.mxu0 %v122
    %155 = vmatprep.subr.mxu0 0.0
    %156 = vmatpush1.msra.mxu0 %v123
    %157 = vmatprep.subr.mxu0 0.0
    %158 = vmatpush1.msra.mxu0 %v124
    %159 = vmatprep.subr.mxu0 0.0
    %160 = vmatpush1.msra.mxu0 %v125
    %161 = vmatprep.subr.mxu0 0.0
    %162 = vmatpush1.msra.mxu0 %v126
    %163 = vmatprep.subr.mxu0 0.0
    %164 = vmatpush1.msra.mxu0 %v127
    %165 = vmatprep.subr.mxu0 0.0
    %166 = vmatpush1.msra.mxu0 %v128
    %167 = vmatprep.subr.mxu0 0.0
    %168 = vmatpush1.msra.mxu0 %v129
    %169 = vmatprep.subr.mxu0 0.0
    %170 = vmatpush1.msra.mxu0 0.0
    %171 = vmatprep.subr.mxu0 0.0
    %172 = vmatpush1.msra.mxu0 0.0
    %173 = vmatprep.subr.mxu0 0.0
    %174 = vmatpush1.msra.mxu0 0.0
    %175 = vmatprep.subr.mxu0 0.0
    %176 = vmatpush1.msra.mxu0 0.0
    %177 = vmatprep.subr.mxu0 0.0
    %178 = vmatpush1.msra.mxu0 0.0
    %179 = vmatprep.subr.mxu0 0.0
    %180 = vmatpush1.msra.mxu0 0.0
    %181 = vmatprep.subr.mxu0 0.0
    %182 = vmatpush1.msra.mxu0 0.0
    %183 = vmatprep.subr.mxu0 0.0
    %184 = vmatpush1.msra.mxu0 0.0
    %185 = vmatprep.subr.mxu0 0.0
    %186 = vmatpush1.msra.mxu0 0.0
    %187 = vmatprep.subr.mxu0 0.0
    %188 = vmatpush1.msra.mxu0 0.0
    %189 = vmatprep.subr.mxu0 0.0
    %190 = vmatpush1.msra.mxu0 0.0
    %191 = vmatprep.subr.mxu0 0.0
    %192 = vmatpush1.msra.mxu0 0.0
    %193 = vmatprep.subr.mxu0 0.0
    %194 = vmatpush1.msra.mxu0 0.0
    %195 = vmatprep.subr.mxu0 0.0
    %196 = vmatpush1.msra.mxu0 0.0
    %197 = vmatprep.subr.mxu0 0.0
    %198 = vmatpush1.msra.mxu0 0.0
    %199 = vmatprep.subr.mxu0 0.0
    %200 = vmatpush1.msra.mxu0 0.0
    %201 = vmatprep.mubr.f32.mxu0 0.0
    %202 = vmatmul.mubr.f32.gmra.mrb[0].mxu0 %v113
    %v203 = vpop.f32.mrb[0].mxu0
    %v204 = vadd.f32 %v135, %v203
    %v205 = vpop.f32.mrb[0].mxu0
    %206 = vdwg.mxu0
    %v207 = vmax.f32 %v204, 0.0
    %v208 = vld [vmem:[%s5] sm:$0xff]
    %v209 = vld [vmem:[%s5 + $0x8] sm:$0xff]
    %v210 = vld [vmem:[%s5 + $0x10] sm:$0xff]
    %v211 = vld [vmem:[%s5 + $0x18] sm:$0xff]
    %v212 = vld [vmem:[%s5 + $0x20] sm:$0xff]
    %v213 = vld [vmem:[%s5 + $0x28] sm:$0xff]
    %v214 = vld [vmem:[%s5 + $0x30] sm:$0xff]
    %v215 = vld [vmem:[%s5 + $0x38] sm:$0xff]
    %v216 = vld [vmem:[%s5 + $0x40] sm:$0xff]
    %v217 = vld [vmem:[%s5 + $0x48] sm:$0xff]
    %v218 = vld [vmem:[%s5 + $0x50] sm:$0xff]
    %v219 = vld [vmem:[%s5 + $0x58] sm:$0xff]
    %v220 = vld [vmem:[%s5 + $0x60] sm:$0xff]
    %v221 = vld [vmem:[%s5 + $0x68] sm:$0xff]
    %v222 = vld [vmem:[%s5 + $0x70] sm:$0xff]
    %v223 = vld [vmem:[%s5 + $0x78] sm:$0xff]
    %v224 = vld [vmem:[%s6] sm:$0x1]
    %v226 = vlaneseq
    %v227 = vshrl.u32 %v226, 7
    %v228 = vsub.s32 0, %v227
    %v229 = vrot.slane %v224, %v228
    %231 = vmatprep.subr.mxu0 0.0
    %232 = vmatpush1.msra.mxu0 %v208
    %233 = vmatprep.subr.mxu0 0.0
    %234 = vmatpush1.msra.mxu0 %v209
    %235 = vmatprep.subr.mxu0 0.0
    %236 = vmatpush1.msra.mxu0 %v210
    %237 = vmatprep.subr.mxu0 0.0
    %238 = vmatpush1.msra.mxu0 %v211
    %239 = vmatprep.subr.mxu0 0.0
    %240 = vmatpush1.msra.mxu0 %v212
    %241 = vmatprep.subr.mxu0 0.0
    %242 = vmatpush1.msra.mxu0 %v213
    %243 = vmatprep.subr.mxu0 0.0
    %244 = vmatpush1.msra.mxu0 %v214
    %245 = vmatprep.subr.mxu0 0.0
    %246 = vmatpush1.msra.mxu0 %v215
    %247 = vmatprep.subr.mxu0 0.0
    %248 = vmatpush1.msra.mxu0 %v216
    %249 = vmatprep.subr.mxu0 0.0
    %250 = vmatpush1.msra.mxu0 %v217
    %251 = vmatprep.subr.mxu0 0.0
    %252 = vmatpush1.msra.mxu0 %v218
    %253 = vmatprep.subr.mxu0 0.0
    %254 = vmatpush1.msra.mxu0 %v219
    %255 = vmatprep.subr.mxu0 0.0
    %256 = vmatpush1.msra.mxu0 %v220
    %257 = vmatprep.subr.mxu0 0.0
    %258 = vmatpush1.msra.mxu0 %v221
    %259 = vmatprep.subr.mxu0 0.0
    %260 = vmatpush1.msra.mxu0 %v222
    %261 = vmatprep.subr.mxu0 0.0
    %262 = vmatpush1.msra.mxu0 %v223
    %263 = vmatprep.subr.mxu0 0.0
    %264 = vmatpush1.msra.mxu0 0.0
    %265 = vmatprep.subr.mxu0 0.0
    %266 = vmatpush1.msra.mxu0 0.0
    %267 = vmatprep.subr.mxu0 0.0
    %268 = vmatpush1.msra.mxu0 0.0
    %269 = vmatprep.subr.mxu0 0.0
    %270 = vmatpush1.msra.mxu0 0.0
    %271 = vmatprep.subr.mxu0 0.0
    %272 = vmatpush1.msra.mxu0 0.0
    %273 = vmatprep.subr.mxu0 0.0
    %274 = vmatpush1.msra.mxu0 0.0
    %275 = vmatprep.subr.mxu0 0.0
    %276 = vmatpush1.msra.mxu0 0.0
    %277 = vmatprep.subr.mxu0 0.0
    %278 = vmatpush1.msra.mxu0 0.0
    %279 = vmatprep.subr.mxu0 0.0
    %280 = vmatpush1.msra.mxu0 0.0
    %281 = vmatprep.subr.mxu0 0.0
    %282 = vmatpush1.msra.mxu0 0.0
    %283 = vmatprep.subr.mxu0 0.0
    %284 = vmatpush1.msra.mxu0 0.0
    %285 = vmatprep.subr.mxu0 0.0
    %286 = vmatpush1.msra.mxu0 0.0
    %287 = vmatprep.subr.mxu0 0.0
    %288 = vmatpush1.msra.mxu0 0.0
    %289 = vmatprep.subr.mxu0 0.0
    %290 = vmatpush1.msra.mxu0 0.0
    %291 = vmatprep.subr.mxu0 0.0
    %292 = vmatpush1.msra.mxu0 0.0
    %293 = vmatprep.subr.mxu0 0.0
    %294 = vmatpush1.msra.mxu0 0.0
    %295 = vmatprep.mubr.f32.mxu0 0.0
    %296 = vmatmul.mubr.f32.gmra.mrb[0].mxu0 %v207
    %v297 = vpop.f32.mrb[0].mxu0
    %v298 = vadd.f32 %v229, %v297
    %v299 = vpop.f32.mrb[0].mxu0
    %300 = vdwg.mxu0
    %v301 = vlaneseq
    %v302 = vand.u32 %v301, 127
    %vm303 = vcmp.lt.s32.totalorder %v302, 0
    %vm304 = vcmp.eq.s32.totalorder %v302, 0
    %vm305 = vmor %vm303, %vm304
    %vm306 = vcmp.eq.s32.totalorder %v302, 5
    %vm307 = vmor %vm305, %vm306
    %vm308 = vcmp.eq.s32.totalorder %v302, 10
    %vm309 = vmor %vm307, %vm308
    %vm310 = vcmp.eq.s32.totalorder %v302, 15
    %vm311 = vmor %vm309, %vm310
    %v312 = vmax.f32 %v298, 0.0
    %v313 = vand.u32 2147483647, %v298
    %v314 = vsub.f32 0.0, %v313
    %v315 = vmul.f32 %v314, 1.442695
    %v316 = vpow.pop %v315
    %v317 = vadd.f32 %v316, 1.0
    %v318 = vlog2.pop %v317
    %v319 = vmul.f32 %v318, 0.6931472
    %v320 = vmul.f32 -0.5, %v316
    %v321 = vadd.f32 %v320, 1.0
    %v322 = vmul.f32 %v321, %v316
    %v323 = vand.u32 2147483647, %v316
    %vm324 = vcmp.lt.f32.partialorder %v323, 0.0004427343
    %v325 = vsel %vm324, %v322, %v319
    %v326 = vadd.f32 %v312, %v325
    %v327 = vsel %vm311, 1, 0
    %vm328 = vcmp.eq.s32.totalorder %v327, 1
    %330 = vrot.lane.b32.xlu0 %v326, 124
    %v331 = vpop.permute.xlu0 %330
    %334 = vrot.lane.b32.xlu0 %v298, 124
    %v335 = vpop.permute.xlu0 %334
    %v337 = vsel %vm328, %v331, %v335
    %vm338 = vcmask 31744
    %339 = vst.msk [vmem:[%s7] sm:$0xff] %vm338, %v298
    %340 = vst.msk [vmem:[#allocation2] sm:$0xff] %vm39, %v337
    // Predicated region
    $region30: #{tpu_custom_call.1} parent=1 // pred_check
      _
    $region31: #{tpu_custom_call.1} parent=1 // pred_check_branch
      %342 = sbr.rel (0) target = $region33
    $region32: #{tpu_custom_call.1} parent=1 // pred_region
      _
    $region33: #{tpu_custom_call.1} parent=1 // pred_fallthru
      _
    // Predicated region
    $region34: #{tpu_custom_call.1} parent=1 // pred_check
      _
    $region35: #{tpu_custom_call.1} parent=1 // pred_check_branch
      %344 = sbr.rel (0) target = $region37
    $region36: #{tpu_custom_call.1} parent=1 // pred_region
      %s346 = ssub.s32 128, 128
      %347 = vsyncadd [#allocation3], %s346
      %s349 = sshll.u32 [#allocation2], 4
      %s350 = int_to_ptr.vmem [resolvable:$true] %s349
      %352 = dma.vmem_to_hbm [thread:$0]  %s350, 128, %s8, [#allocation3]
    $region37: #{tpu_custom_call.1} parent=1 // pred_fallthru
      _
    // Predicated region
    $region38: #{tpu_custom_call.1} parent=1 // pred_check
      _
    $region39: #{tpu_custom_call.1} parent=1 // pred_check_branch
      %354 = sbr.rel (0) target = $region41
    $region40: #{tpu_custom_call.1} parent=1 // pred_region
      _
    $region41: #{tpu_custom_call.1} parent=1 // pred_fallthru
      _
    // Predicated region
    $region42: #{tpu_custom_call.1} parent=1 // pred_check
      _
    $region43: #{tpu_custom_call.1} parent=1 // pred_check_branch
      %356 = sbr.rel (0) target = $region45
    $region44: #{tpu_custom_call.1} parent=1 // pred_region
      %357 = dma.done [#allocation3], 128
    $region45: #{tpu_custom_call.1} parent=1 // pred_fallthru
      _
    %358 = vsyncpa [#allocation3], 1

</llo_original>
